<compile_context>
chip_gen: v7x
topology: tpu7x:2x2x1
jax: 0.10.0
libtpu: 0.0.40
codegen_flags: <defaults>
</compile_context>

<pallas_src>
import functools

import jax
import jax.numpy as jnp
from jax.experimental import pallas as pl
from jax.experimental.pallas import tpu as pltpu


def _round_up(x, m):
    return ((x + m - 1) // m) * m


def _yolo_decode_kernel(x_ref, w_ref, c_ref, g_ref, o_ref, *, n_sig):
    """Channel-major 1x1-conv + YOLO decode for one (batch, HW-tile) block.

    x_ref : (1, C, THW)   f32/bf16  feature-map slab (free reshape upstream)
    w_ref : (OCp, C)      bf16      permuted + row-padded 1x1-conv weight
    c_ref : (OCp, 8)      f32       packed per-row constants:
                                      col 0 bias, col 1 sigmoid scale (stride on
                                      x/y rows else 1), col 2 x-row mask,
                                      col 3 y-row mask, col 4 anchor*stride on
                                      w/h rows, cols 5-7 zero pad
    g_ref : (2, THW)      f32       row 0: grid-col offset * stride per lane
                                      row 1: grid-row offset * stride per lane
    o_ref : (1, OCp, THW)           decoded predictions (channel-major)

    Rows [0, n_sig)   : sigmoid rows (x, y, obj, class + zero pad), n_sig % 8 == 0
    Rows [n_sig, OCp) : exp rows (w, h + zero pad)
    """
    x = x_ref[0]
    if x.dtype != jnp.bfloat16:            # accept bf16 activations directly
        x = x.astype(jnp.bfloat16)
    w = w_ref[...]                          # (OCp, C) bf16
    consts = c_ref[...]                     # (OCp, 8) f32

    # 1x1 conv == (OCp, C) @ (C, THW) on the MXU, f32 accumulation, + bias.
    y = jnp.dot(w, x, preferred_element_type=jnp.float32) + consts[:, 0:1]

    xs = g_ref[0:1, :]                      # (1, THW) grid-col offset * stride
    ys = g_ref[1:2, :]                      # (1, THW) grid-row offset * stride

    # Sigmoid slab: x/y/obj/class rows.  x/y rows additionally get * stride
    # and the grid shift (masks / scales are per-row constants).
    y_sig = y[0:n_sig, :]
    sig = (jax.nn.sigmoid(y_sig) * consts[0:n_sig, 1:2]
           + consts[0:n_sig, 2:3] * xs
           + consts[0:n_sig, 3:4] * ys)

    # Exp slab: w/h rows only (exactly what torch.exp sees).  Padded rows have
    # zero weight/bias, so exp(0) * 0 == 0 -- no overflow possible.
    y_exp = y[n_sig:, :]
    ex = jnp.exp(y_exp) * consts[n_sig:, 4:5]

    o_ref[0, 0:n_sig, :] = sig.astype(o_ref.dtype)
    o_ref[0, n_sig:, :] = ex.astype(o_ref.dtype)


def _hw_tiles(hw_pad):
    return [t for t in range(128, hw_pad + 1, 128) if hw_pad % t == 0]


def _vmem_bytes_per_step(c, ocp, thw, x_bytes, out_bytes):
    x_blk = 2 * c * thw * x_bytes                    # double-buffered input slab
    x_bf16 = c * thw * 2 if x_bytes == 4 else 0      # in-kernel bf16 copy
    out_blk = 2 * ocp * thw * out_bytes              # double-buffered output
    w_blk = 2 * ocp * c * 2                          # bf16 weight
    const_blk = 2 * (ocp * 128 * 4 + 8 * thw * 4)    # lane-padded consts + grid
    acc = ocp * thw * 4                              # f32 matmul result / temps
    return x_blk + x_bf16 + out_blk + w_blk + const_blk + acc


def _pick_hw_tile(hw_pad, n_batch, c, ocp, x_bytes, out_bytes, target, budget):
    tiles = _hw_tiles(hw_pad)
    under = [t for t in tiles if t <= target]
    thw = max(under) if under else tiles[0]
    # Stay within the per-step VMEM budget (v5e 16 MiB scoped default,
    # v7x 64 MiB physical).
    while (_vmem_bytes_per_step(c, ocp, thw, x_bytes, out_bytes) > budget
           and any(t < thw for t in tiles)):
        thw = max(t for t in tiles if t < thw)
    # Give the v7x megacore (2 TensorCores) at least ~4 grid steps when possible.
    while n_batch * (hw_pad // thw) < 4 and any(t < thw for t in tiles):
        thw = max(t for t in tiles if t < thw)
    return thw


def yolo_layer_forward(xin, conv_w, conv_b, masked_anchors, n_classes, stride,
                       *, hw_tile_target=1024, out_dtype=jnp.float32,
                       channel_major_out=False,
                       vmem_budget_bytes=24 * 1024 * 1024):
    """Equivalent of YOLOLayer.forward(xin, labels=None) (inference decode).

    xin            : (N, C, H, W) float32 or bfloat16 (NCHW, PyTorch layout)
    conv_w         : (OC, C, 1, 1) float32 (PyTorch Conv2d weight layout)
    conv_b         : (OC,) float32
    masked_anchors : (n_anchors, 2) float32, already divided by stride
    returns        : (N, n_anchors*H*W, 5+n_classes) matching PyTorch, or the
                     lane-dense channel-major (N, n_anchors, 5+n_classes, H, W)
                     if channel_major_out=True (skips the XLA transpose).

    Note: the conv uses bf16 operands with f32 accumulation (vs. PyTorch f32);
    for strict-parity checks compare against a bf16-rounded reference.
    """
    N, C, H, W = xin.shape
    assert H == W, "YOLO layer expects square feature maps"
    fsize = H
    HW = H * W
    A = int(masked_anchors.shape[0])
    n_ch = 5 + n_classes
    OC = A * n_ch
    sstride = float(stride)

    # ---- channel permutation: sigmoid rows first, exp (w/h) rows last, each
    #      slab zero-padded to a sublane multiple of 8 --------------------------
    x_rows = [a * n_ch + 0 for a in range(A)]
    y_rows = [a * n_ch + 1 for a in range(A)]
    w_rows = [a * n_ch + 2 for a in range(A)]
    h_rows = [a * n_ch + 3 for a in range(A)]
    oc_rows = [a * n_ch + k for a in range(A) for k in range(4, n_ch)]

    sig_perm = x_rows + y_rows + oc_rows            # sigmoid rows, length S
    exp_perm = w_rows + h_rows                      # exp rows,     length 2A
    S, E = len(sig_perm), len(exp_perm)
    Sp, Ep = _round_up(S, 8), _round_up(E, 8)
    OCp = Sp + Ep

    perm = jnp.array(sig_perm + exp_perm, dtype=jnp.int32)              # (OC,)
    pos = jnp.concatenate(
        [jnp.arange(S), Sp + jnp.arange(E)]).astype(jnp.int32)          # (OC,)

    w_flat = conv_w.reshape(OC, C).astype(jnp.float32)
    wmat = jnp.zeros((OCp, C), jnp.float32).at[pos].set(w_flat[perm])
    wmat = wmat.astype(jnp.bfloat16)
    bias = jnp.zeros((OCp,), jnp.float32).at[pos].set(
        conv_b.astype(jnp.float32)[perm])

    # ---- packed per-row constants (OCp, 8) ------------------------------------
    sgsc = jnp.ones((OCp,), jnp.float32).at[jnp.arange(2 * A)].set(sstride)
    isx = jnp.zeros((OCp,), jnp.float32).at[jnp.arange(A)].set(1.0)
    isy = jnp.zeros((OCp,), jnp.float32).at[A + jnp.arange(A)].set(1.0)
    aw = masked_anchors[:, 0].astype(jnp.float32) * sstride
    ah = masked_anchors[:, 1].astype(jnp.float32) * sstride
    ansc = (jnp.zeros((OCp,), jnp.float32)
            .at[Sp + jnp.arange(A)].set(aw)
            .at[Sp + A + jnp.arange(A)].set(ah))
    zeros = jnp.zeros((OCp,), jnp.float32)
    consts = jnp.stack([bias, sgsc, isx, isy, ansc, zeros, zeros, zeros],
                       axis=1)                                           # (OCp, 8)

    # ---- lane-padded spatial slab & packed grid offsets ------------------------
    HWp = _round_up(HW, 128)
    x_cm = xin.reshape(N, C, HW)                 # free reshape, no HBM transpose
    if HWp != HW:
        x_cm = jnp.pad(x_cm, ((0, 0), (0, 0), (0, HWp - HW)))
    hw_idx = jnp.arange(HWp)
    xs = (hw_idx % fsize).astype(jnp.float32) * sstride
    ys = (hw_idx // fsize).astype(jnp.float32) * sstride
    grid_xy = jnp.stack([xs, ys], axis=0)                                # (2, HWp)

    x_bytes = 2 if x_cm.dtype == jnp.bfloat16 else 4
    out_bytes = jnp.dtype(out_dtype).itemsize
    thw = _pick_hw_tile(HWp, N, C, OCp, x_bytes, out_bytes,
                        hw_tile_target, vmem_budget_bytes)
    grid = (N, HWp // thw)

    kernel = functools.partial(_yolo_decode_kernel, n_sig=Sp)
    out = pl.pallas_call(
        kernel,
        out_shape=jax.ShapeDtypeStruct((N, OCp, HWp), out_dtype),
        grid=grid,
        in_specs=[
            pl.BlockSpec((1, C, thw), lambda b, t: (b, 0, t)),   # x slab
            pl.BlockSpec((OCp, C), lambda b, t: (0, 0)),         # weight
            pl.BlockSpec((OCp, 8), lambda b, t: (0, 0)),         # packed consts
            pl.BlockSpec((2, thw), lambda b, t: (0, t)),         # grid offsets
        ],
        out_specs=pl.BlockSpec((1, OCp, thw), lambda b, t: (b, 0, t)),
        compiler_params=pltpu.CompilerParams(
            dimension_semantics=("parallel", "parallel"),
            vmem_limit_bytes=32 * 1024 * 1024),
    )(x_cm, wmat, consts, grid_xy)

    # ---- undo row permutation / padding, drop pad lanes ------------------------
    row_of = jnp.zeros((OC,), jnp.int32).at[perm].set(pos)
    out = out[:, row_of, :HW]                                            # (N, OC, HW)

    if channel_major_out:
        # Lane-dense channel-major layout for consumers that can take it
        # (skips the lane-narrow HBM transpose entirely).
        return out.reshape(N, A, n_ch, H, W)

    # PyTorch return layout (N, A*H*W, n_ch): inherently lane-narrow last dim,
    # produced by a single XLA transpose outside the kernel.
    return (out.reshape(N, A, n_ch, H, W)
               .transpose(0, 1, 3, 4, 2)
               .reshape(N, A * HW, n_ch))


def _reference_forward(xin, conv_w, conv_b, masked_anchors, n_classes, stride):
    """Pure-JAX reference mirroring the PyTorch forward (labels=None).

    Uses the same bf16-rounded matmul operands as the kernel so the check only
    measures the decode math, not the (intentional) bf16 matmul rounding.
    """
    N, C, H, W = xin.shape
    A = masked_anchors.shape[0]
    n_ch = 5 + n_classes
    OC = A * n_ch
    fsize = H

    w_bf = conv_w.reshape(OC, C).astype(jnp.bfloat16)
    x_bf = xin.astype(jnp.bfloat16)
    y = jnp.einsum("nchw,oc->nohw", x_bf, w_bf,
                   preferred_element_type=jnp.float32) + conv_b[None, :, None, None]
    y = y.reshape(N, A, n_ch, fsize, fsize).transpose(0, 1, 3, 4, 2)

    sig_idx = jnp.array([0, 1] + list(range(4, n_ch)))
    out = y.at[..., sig_idx].set(jax.nn.sigmoid(y[..., sig_idx]))

    x_shift = jnp.broadcast_to(jnp.arange(fsize, dtype=jnp.float32),
                               (N, A, fsize, fsize))
    y_shift = jnp.broadcast_to(jnp.arange(fsize, dtype=jnp.float32)[:, None],
                               (N, A, fsize, fsize))
    w_anch = jnp.broadcast_to(masked_anchors[:, 0].reshape(1, A, 1, 1),
                              (N, A, fsize, fsize))
    h_anch = jnp.broadcast_to(masked_anchors[:, 1].reshape(1, A, 1, 1),
                              (N, A, fsize, fsize))

    pred = out
    pred = pred.at[..., 0].add(x_shift)
    pred = pred.at[..., 1].add(y_shift)
    pred = pred.at[..., 2].set(jnp.exp(pred[..., 2]) * w_anch)
    pred = pred.at[..., 3].set(jnp.exp(pred[..., 3]) * h_anch)
    pred = pred.at[..., :4].multiply(float(stride))
    return pred.reshape(N, -1, n_ch)


if __name__ == "__main__":
    # --- model config (mirrors YOLOLayer.__init__) -----------------------------
    anchors = [(10, 13), (16, 30), (33, 23), (30, 61), (62, 45),
               (59, 119), (116, 90), (156, 198), (373, 326)]
    anch_mask = [[6, 7, 8], [3, 4, 5], [0, 1, 2]]
    n_classes = 3
    strides = [32, 16, 8]

    key = jax.random.PRNGKey(0)

    # Case 1: batch=2, 128-multiple HW (no padding path, multi-tile grid).
    # Case 2: batch=1, fsize=13 -> HW=169 padded to 256 (ragged-HW + OC/exp-slab
    #         padding + small-batch megacore tile-shrink paths).
    for layer_no, batch, in_ch, fsize in [(0, 2, 4, 16), (1, 1, 8, 13)]:
        stride = strides[layer_no]
        all_anchors_grid = [(w / stride, h / stride) for w, h in anchors]
        masked_anchors = jnp.array(
            [all_anchors_grid[i] for i in anch_mask[layer_no]], dtype=jnp.float32)
        n_anchors = len(anch_mask[layer_no])
        n_ch = 5 + n_classes
        out_ch = n_anchors * n_ch

        key, k_x, k_w, k_b = jax.random.split(key, 4)
        xin = jax.random.normal(k_x, (batch, in_ch, fsize, fsize),
                                dtype=jnp.float32)
        conv_w = 0.1 * jax.random.normal(k_w, (out_ch, in_ch, 1, 1),
                                         dtype=jnp.float32)
        conv_b = 0.1 * jax.random.normal(k_b, (out_ch,), dtype=jnp.float32)

        pred = yolo_layer_forward(xin, conv_w, conv_b, masked_anchors,
                                  n_classes, stride)
        pred = jax.block_until_ready(pred)

        ref = _reference_forward(xin, conv_w, conv_b, masked_anchors,
                                 n_classes, stride)
        assert pred.shape == (batch, n_anchors * fsize * fsize, n_ch), pred.shape
        max_err = float(jnp.max(jnp.abs(pred - ref)))
        assert jnp.allclose(pred, ref, atol=2e-3, rtol=2e-3), max_err

    print("KERNEL_OK")
</pallas_src>

<mosaic_0001>
module attributes {stable_mosaic.version = 11 : i64} {
  func.func @_yolo_decode_kernel(%arg0: i32, %arg1: i32, %arg2: memref<1x4x128xf32, #tpu.memory_space<vmem>>, %arg3: memref<32x4xbf16, #tpu.memory_space<vmem>>, %arg4: memref<32x8xf32, #tpu.memory_space<vmem>>, %arg5: memref<2x128xf32, #tpu.memory_space<vmem>>, %arg6: memref<1x32x128xf32, #tpu.memory_space<vmem>>) attributes {dimension_semantics = [#tpu.dimension_semantics<parallel>, #tpu.dimension_semantics<parallel>], iteration_bounds = array<i64: 2, 2>, scalar_prefetch = 0 : i64, scratch_operands = 0 : i64, tpu.core_type = #tpu.core_type<tc>, window_params = [{transform_indices = @transform_0, window_bounds = array<i64: 1, 4, 128>}, {pipeline_mode = #tpu.pipeline_mode<synchronous>, transform_indices = @transform_1, window_bounds = array<i64: 32, 4>}, {pipeline_mode = #tpu.pipeline_mode<synchronous>, transform_indices = @transform_2, window_bounds = array<i64: 32, 8>}, {transform_indices = @transform_3, window_bounds = array<i64: 2, 128>}, {transform_indices = @transform_4, window_bounds = array<i64: 1, 32, 128>}]} {
    %c0 = arith.constant 0 : index
    %c0_0 = arith.constant 0 : index
    %c0_1 = arith.constant 0 : index
    %0 = vector.load %arg2[%c0, %c0_0, %c0_1] : memref<1x4x128xf32, #tpu.memory_space<vmem>>, vector<1x4x128xf32>
    %1 = vector.shape_cast %0 : vector<1x4x128xf32> to vector<4x128xf32>
    %2 = arith.truncf %1 : vector<4x128xf32> to vector<4x128xbf16>
    %c0_2 = arith.constant 0 : index
    %c0_3 = arith.constant 0 : index
    %3 = vector.load %arg3[%c0_2, %c0_3] : memref<32x4xbf16, #tpu.memory_space<vmem>>, vector<32x4xbf16>
    %c0_4 = arith.constant 0 : index
    %c0_5 = arith.constant 0 : index
    %4 = vector.load %arg4[%c0_4, %c0_5] : memref<32x8xf32, #tpu.memory_space<vmem>>, vector<32x8xf32>
    %cst = arith.constant dense<0.000000e+00> : vector<32x128xf32>
    %5 = tpu.matmul %3, %2, %cst {dimension_numbers = #tpu.dot_dimension_numbers<[1], [0], [0], [1], [0, 0, 1, 1], [], []>} : vector<32x4xbf16>, vector<4x128xbf16>, vector<32x128xf32> -> vector<32x128xf32>
    %6 = vector.extract_strided_slice %4 {offsets = [0, 0], sizes = [32, 1], strides = [1, 1]} : vector<32x8xf32> to vector<32x1xf32>
    %7 = vector.broadcast %6 : vector<32x1xf32> to vector<32x128xf32>
    %8 = arith.addf %5, %7 : vector<32x128xf32>
    %c0_6 = arith.constant 0 : index
    %c0_7 = arith.constant 0 : index
    %9 = vector.load %arg5[%c0_6, %c0_7] : memref<2x128xf32, #tpu.memory_space<vmem>>, vector<1x128xf32>
    %c1 = arith.constant 1 : index
    %c0_8 = arith.constant 0 : index
    %10 = vector.load %arg5[%c1, %c0_8] : memref<2x128xf32, #tpu.memory_space<vmem>>, vector<1x128xf32>
    %11 = vector.extract_strided_slice %8 {offsets = [0, 0], sizes = [24, 128], strides = [1, 1]} : vector<32x128xf32> to vector<24x128xf32>
    %12 = arith.negf %11 : vector<24x128xf32>
    %13 = math.exp %12 : vector<24x128xf32>
    %cst_9 = arith.constant 1.000000e+00 : f32
    %14 = vector.broadcast %cst_9 : f32 to vector<24x128xf32>
    %15 = arith.addf %14, %13 : vector<24x128xf32>
    %16 = arith.divf %14, %15 : vector<24x128xf32>
    %17 = vector.extract_strided_slice %4 {offsets = [0, 1], sizes = [24, 1], strides = [1, 1]} : vector<32x8xf32> to vector<24x1xf32>
    %18 = vector.broadcast %17 : vector<24x1xf32> to vector<24x128xf32>
    %19 = arith.mulf %16, %18 : vector<24x128xf32>
    %20 = vector.extract_strided_slice %4 {offsets = [0, 2], sizes = [24, 1], strides = [1, 1]} : vector<32x8xf32> to vector<24x1xf32>
    %21 = vector.broadcast %20 : vector<24x1xf32> to vector<24x128xf32>
    %22 = vector.broadcast %9 : vector<1x128xf32> to vector<24x128xf32>
    %23 = arith.mulf %21, %22 : vector<24x128xf32>
    %24 = arith.addf %19, %23 : vector<24x128xf32>
    %25 = vector.extract_strided_slice %4 {offsets = [0, 3], sizes = [24, 1], strides = [1, 1]} : vector<32x8xf32> to vector<24x1xf32>
    %26 = vector.broadcast %25 : vector<24x1xf32> to vector<24x128xf32>
    %27 = vector.broadcast %10 : vector<1x128xf32> to vector<24x128xf32>
    %28 = arith.mulf %26, %27 : vector<24x128xf32>
    %29 = arith.addf %24, %28 : vector<24x128xf32>
    %30 = vector.extract_strided_slice %8 {offsets = [24, 0], sizes = [8, 128], strides = [1, 1]} : vector<32x128xf32> to vector<8x128xf32>
    %31 = math.exp %30 : vector<8x128xf32>
    %32 = vector.extract_strided_slice %4 {offsets = [24, 4], sizes = [8, 1], strides = [1, 1]} : vector<32x8xf32> to vector<8x1xf32>
    %33 = vector.broadcast %32 : vector<8x1xf32> to vector<8x128xf32>
    %34 = arith.mulf %31, %33 : vector<8x128xf32>
    %c0_10 = arith.constant 0 : index
    %c0_11 = arith.constant 0 : index
    %c0_12 = arith.constant 0 : index
    %35 = vector.load %arg6[%c0_10, %c0_11, %c0_12] : memref<1x32x128xf32, #tpu.memory_space<vmem>>, vector<1x24x128xf32>
    %36 = vector.shape_cast %35 : vector<1x24x128xf32> to vector<24x128xf32>
    %37 = vector.shape_cast %29 : vector<24x128xf32> to vector<1x24x128xf32>
    tpu.vector_store %arg6[%c0_10, %c0_11, %c0_12], %37 {strides = array<i32>} : memref<1x32x128xf32, #tpu.memory_space<vmem>>, vector<1x24x128xf32>,
    %c0_13 = arith.constant 0 : index
    %c24 = arith.constant 24 : index
    %c0_14 = arith.constant 0 : index
    %38 = vector.load %arg6[%c0_13, %c24, %c0_14] : memref<1x32x128xf32, #tpu.memory_space<vmem>>, vector<1x8x128xf32>
    %39 = vector.shape_cast %38 : vector<1x8x128xf32> to vector<8x128xf32>
    %40 = vector.shape_cast %34 : vector<8x128xf32> to vector<1x8x128xf32>
    tpu.vector_store %arg6[%c0_13, %c24, %c0_14], %40 {strides = array<i32>} : memref<1x32x128xf32, #tpu.memory_space<vmem>>, vector<1x8x128xf32>,
    return
  }
  func.func @transform_0(%arg0: i32, %arg1: i32) -> (i32, i32, i32) {
    %c0_i32 = arith.constant 0 : i32
    %c0_i32_0 = arith.constant 0 : i32
    return %arg0, %c0_i32, %arg1 : i32, i32, i32
  }
  func.func @transform_1(%arg0: i32, %arg1: i32) -> (i32, i32) {
    %c0_i32 = arith.constant 0 : i32
    %c0_i32_0 = arith.constant 0 : i32
    %c0_i32_1 = arith.constant 0 : i32
    return %c0_i32, %c0_i32_0 : i32, i32
  }
  func.func @transform_2(%arg0: i32, %arg1: i32) -> (i32, i32) {
    %c0_i32 = arith.constant 0 : i32
    %c0_i32_0 = arith.constant 0 : i32
    %c0_i32_1 = arith.constant 0 : i32
    return %c0_i32, %c0_i32_0 : i32, i32
  }
  func.func @transform_3(%arg0: i32, %arg1: i32) -> (i32, i32) {
    %c0_i32 = arith.constant 0 : i32
    %c0_i32_0 = arith.constant 0 : i32
    return %c0_i32, %arg1 : i32, i32
  }
  func.func @transform_4(%arg0: i32, %arg1: i32) -> (i32, i32, i32) {
    %c0_i32 = arith.constant 0 : i32
    %c0_i32_0 = arith.constant 0 : i32
    return %arg0, %c0_i32, %arg1 : i32, i32, i32
  }
}

</mosaic_0001>

<llo_original>
// kernel: tpu_custom_call.1
$region0: #{tpu_custom_call.1}
  #allocation0 [shape = 'u32[]', space=smem, size = 0x4, offset = 0x4, fixed_abs, tag = 'smem constant byte address 0x4 - core index']
  #allocation1 [shape = 'u32[144,128]{1,0:T(1,128)}', space=vmem, size = 0x12000, scoped, tag = 'internal scratch']
  %s0 = inlined_call_operand.vmem [shape: f32[2,4,256], index: 0, kind: input, shape index: {}]
  %s1 = inlined_call_operand.vmem [shape: bf16[32,4], index: 1, kind: input, shape index: {}]
  %s2 = inlined_call_operand.vmem [shape: f32[32,8], index: 2, kind: input, shape index: {}]
  %s3 = inlined_call_operand.vmem [shape: f32[2,256], index: 3, kind: input, shape index: {}]
  %s4 = inlined_call_operand.hbm [shape: f32[2,32,256], index: 4, kind: output, shape index: {}]
  %s5 = sld [smem:[#allocation0]]
  $region49: #{tpu_custom_call.1} parent=0
    _
  %s7 = ssub.s32 1, %s5
  %s8 = scalar_select 0, %s7, %s5
  $region1: #{tpu_custom_call.1} parent=0
    #allocation2 [shape = 'u8[32768]{0}', space=vmem, size = 0x8000, scoped, tag = 'output window, operand 0']
    #allocation3 [shape = 's32[2]{0}', space=sflag, size = 0x8, scoped, tag = 'scoped memory for tpu_custom_call.1']
    %9 = vsyncpa [#allocation3], 0
    %s10 = scalar_lea.sflag [#allocation3], 1
    %11 = vsyncpa %s10, 0
    loop: start=0, step=1, limit=6
    $region2: #{tpu_custom_call.1} parent=1 // loop_pre_header
      _
    $region3: #{tpu_custom_call.1} parent=1 // loop_header
      %s13 = sphi 0, %s17
      %p14 = scmp.ge.s32.totalorder %s13, 6
      %s20 = sphi 0, %s32
      %s21 = sphi 0, %s28
      %s22 = sphi 0, %s20
      %s23 = sphi 0, %s21
      %s24 = sphi 0, %s22
      %s25 = sphi 0, %s23
      %s37 = sphi 0, %s39
      %s40 = sphi 0, %s37
      %s41 = sphi 0, %s40
      %s57 = sphi 0, %s41
      %s61 = sphi 0, %s61
      %s63 = sphi 0, %s61
      %s64 = sphi 0, %s63
      %s78 = sphi 0, %s64
      %s82 = sphi 0, %s82
      %s84 = sphi 0, %s82
      %s85 = sphi 0, %s84
      %s99 = sphi 0, %s85
      %s105 = sphi 0, %s107
      %s108 = sphi 0, %s105
      %s109 = sphi 0, %s108
      %s125 = sphi 0, %s109
      %s133 = sphi 0, %s135
      %s136 = sphi 0, %s133
      %s137 = sphi 0, %s136
      %s153 = sphi 0, %s137
    $region4: #{tpu_custom_call.1} parent=1 // loop_header_branch
      %16 = sbr.rel (%p14) target = $region8
    $region5: #{tpu_custom_call.1} parent=1 // loop_body
      %s18 = ssub.s32 %s13, 1
      %s19 = ssub.s32 %s13, 2
      %s26 = sadd.s32 1, %s21
      %p27 = scmp.ge.s32.totalorder %s26, 2
      %s28 = scalar_select %p27, 0, %s26
      %s29 = sadd.s32 1, %s20
      %s30 = scalar_select %p27, %s29, %s20
      %p31 = scmp.ge.s32.totalorder %s30, 2
      %s32 = scalar_select %p31, 0, %s30
      %s33 = ssub.s32 %s20, %s32
      %s34 = ssub.s32 %s21, %s28
      %s35 = sor.u32 %s33, %s34
      %p36 = scmp.eq.s32.totalorder %s35, 0
      %s38 = sadd.s32 %s37, 1
      %s39 = scalar_select %p36, %s37, %s38
      %p42 = pneg %p36
      %p43 = scmp.eq.s32.totalorder %s13, 3
      %p44 = por %p42, %p43
      %p45 = scmp.ne.s32.totalorder %s37, %s40
      %p46 = scmp.eq.s32.totalorder %s13, 0
      %p47 = por %p45, %p46
      %p48 = scmp.ne.s32.totalorder %s37, %s40
      %p49 = scmp.eq.s32.totalorder %s18, 3
      %p50 = por %p48, %p49
      %p51 = scmp.ne.s32.totalorder %s40, %s41
      %p52 = scmp.eq.s32.totalorder %s18, 0
      %p53 = por %p51, %p52
      %p54 = scmp.ne.s32.totalorder %s40, %s41
      %p55 = scmp.eq.s32.totalorder %s19, 3
      %p56 = por %p54, %p55
      %p58 = scmp.ne.s32.totalorder %s41, %s57
      %p59 = scmp.eq.s32.totalorder %s19, 0
      %p60 = por %p58, %p59
      %s62 = sadd.s32 %s61, 1
      %p65 = scmp.eq.s32.totalorder %s13, 3
      %p66 = scmp.ne.s32.totalorder %s61, %s63
      %p67 = scmp.eq.s32.totalorder %s13, 0
      %p68 = por %p66, %p67
      %p69 = scmp.ne.s32.totalorder %s61, %s63
      %p70 = scmp.eq.s32.totalorder %s18, 3
      %p71 = por %p69, %p70
      %p72 = scmp.ne.s32.totalorder %s63, %s64
      %p73 = scmp.eq.s32.totalorder %s18, 0
      %p74 = por %p72, %p73
      %p75 = scmp.ne.s32.totalorder %s63, %s64
      %p76 = scmp.eq.s32.totalorder %s19, 3
      %p77 = por %p75, %p76
      %p79 = scmp.ne.s32.totalorder %s64, %s78
      %p80 = scmp.eq.s32.totalorder %s19, 0
      %p81 = por %p79, %p80
      %s83 = sadd.s32 %s82, 1
      %p86 = scmp.eq.s32.totalorder %s13, 3
      %p87 = scmp.ne.s32.totalorder %s82, %s84
      %p88 = scmp.eq.s32.totalorder %s13, 0
      %p89 = por %p87, %p88
      %p90 = scmp.ne.s32.totalorder %s82, %s84
      %p91 = scmp.eq.s32.totalorder %s18, 3
      %p92 = por %p90, %p91
      %p93 = scmp.ne.s32.totalorder %s84, %s85
      %p94 = scmp.eq.s32.totalorder %s18, 0
      %p95 = por %p93, %p94
      %p96 = scmp.ne.s32.totalorder %s84, %s85
      %p97 = scmp.eq.s32.totalorder %s19, 3
      %p98 = por %p96, %p97
      %p100 = scmp.ne.s32.totalorder %s85, %s99
      %p101 = scmp.eq.s32.totalorder %s19, 0
      %p102 = por %p100, %p101
      %s103 = ssub.s32 %s21, %s28
      %p104 = scmp.eq.s32.totalorder %s103, 0
      %s106 = sadd.s32 %s105, 1
      %s107 = scalar_select %p104, %s105, %s106
      %p110 = pneg %p104
      %p111 = scmp.eq.s32.totalorder %s13, 3
      %p112 = por %p110, %p111
      %p113 = scmp.ne.s32.totalorder %s105, %s108
      %p114 = scmp.eq.s32.totalorder %s13, 0
      %p115 = por %p113, %p114
      %p116 = scmp.ne.s32.totalorder %s105, %s108
      %p117 = scmp.eq.s32.totalorder %s18, 3
      %p118 = por %p116, %p117
      %p119 = scmp.ne.s32.totalorder %s108, %s109
      %p120 = scmp.eq.s32.totalorder %s18, 0
      %p121 = por %p119, %p120
      %p122 = scmp.ne.s32.totalorder %s108, %s109
      %p123 = scmp.eq.s32.totalorder %s19, 3
      %p124 = por %p122, %p123
      %p126 = scmp.ne.s32.totalorder %s109, %s125
      %p127 = scmp.eq.s32.totalorder %s19, 0
      %p128 = por %p126, %p127
      %s129 = ssub.s32 %s20, %s32
      %s130 = ssub.s32 %s21, %s28
      %s131 = sor.u32 %s129, %s130
      %p132 = scmp.eq.s32.totalorder %s131, 0
      %s134 = sadd.s32 %s133, 1
      %s135 = scalar_select %p132, %s133, %s134
      %p138 = pneg %p132
      %p139 = scmp.eq.s32.totalorder %s13, 3
      %p140 = por %p138, %p139
      %p141 = scmp.ne.s32.totalorder %s133, %s136
      %p142 = scmp.eq.s32.totalorder %s13, 0
      %p143 = por %p141, %p142
      %p144 = scmp.ne.s32.totalorder %s133, %s136
      %p145 = scmp.eq.s32.totalorder %s18, 3
      %p146 = por %p144, %p145
      %p147 = scmp.ne.s32.totalorder %s136, %s137
      %p148 = scmp.eq.s32.totalorder %s18, 0
      %p149 = por %p147, %p148
      %p150 = scmp.ne.s32.totalorder %s136, %s137
      %p151 = scmp.eq.s32.totalorder %s19, 3
      %p152 = por %p150, %p151
      %p154 = scmp.ne.s32.totalorder %s137, %s153
      %p155 = scmp.eq.s32.totalorder %s19, 0
      %p156 = por %p154, %p155
      %p157 = scmp.le.s32.totalorder 1, %s13
      %p158 = scmp.lt.s32.totalorder %s13, 5
      %p159 = pnand %p157, %p158
      %p160 = pneg %p159
      // Predicated region
      $region9: #{tpu_custom_call.1} parent=5 // pred_check
        _
      $region10: #{tpu_custom_call.1} parent=5 // pred_check_branch
        %162 = sbr.rel (%p159) target = $region12
      $region11: #{tpu_custom_call.1} parent=5 // pred_region
        %s163 = ssub.s32 %s13, 1
        // Predicated region
        $region13: #{tpu_custom_call.1} parent=11 // pred_check
          %p164 = pneg %p74
        $region14: #{tpu_custom_call.1} parent=11 // pred_check_branch
          %166 = sbr.rel (%p164) target = $region16
        $region15: #{tpu_custom_call.1} parent=11 // pred_region
          _
        $region16: #{tpu_custom_call.1} parent=11 // pred_fallthru
          _
        // Predicated region
        $region17: #{tpu_custom_call.1} parent=11 // pred_check
          %p167 = pneg %p95
        $region18: #{tpu_custom_call.1} parent=11 // pred_check_branch
          %169 = sbr.rel (%p167) target = $region20
        $region19: #{tpu_custom_call.1} parent=11 // pred_region
          _
        $region20: #{tpu_custom_call.1} parent=11 // pred_fallthru
          _
      $region12: #{tpu_custom_call.1} parent=5 // pred_fallthru
        _
      %p170 = scmp.lt.s32.totalorder %s13, 4
      // Predicated region
      $region21: #{tpu_custom_call.1} parent=5 // pred_check
        %p171 = pneg %p170
      $region22: #{tpu_custom_call.1} parent=5 // pred_check_branch
        %173 = sbr.rel (%p171) target = $region24
      $region23: #{tpu_custom_call.1} parent=5 // pred_region
        // Predicated region
        $region25: #{tpu_custom_call.1} parent=23 // pred_check
          %p174 = pneg %p47
        $region26: #{tpu_custom_call.1} parent=23 // pred_check_branch
          %176 = sbr.rel (%p174) target = $region28
        $region27: #{tpu_custom_call.1} parent=23 // pred_region
          %p177 = scmp.lt.s32.totalorder %s20, 1
          %s178 = scalar_select %p177, %s20, 1
          %p179 = scmp.lt.s32.totalorder %s21, 1
          %s180 = scalar_select %p179, %s21, 1
          %s181 = smul.addr %s178, 2
          %s182 = sadd.s32 %s180, %s181
          %s183 = smul.addr %s182, 4
          %s184 = scalar_lea.vmem %s0, %s183
        $region28: #{tpu_custom_call.1} parent=23 // pred_fallthru
          _
        // Predicated region
        $region29: #{tpu_custom_call.1} parent=23 // pred_check
          %p185 = pneg %p115
        $region30: #{tpu_custom_call.1} parent=23 // pred_check_branch
          %187 = sbr.rel (%p185) target = $region32
        $region31: #{tpu_custom_call.1} parent=23 // pred_region
          %p188 = scmp.lt.s32.totalorder %s21, 1
          %s189 = scalar_select %p188, %s21, 1
          %s190 = smul.addr %s189, 2
          %s191 = scalar_lea.vmem %s3, %s190
        $region32: #{tpu_custom_call.1} parent=23 // pred_fallthru
          _
      $region24: #{tpu_custom_call.1} parent=5 // pred_fallthru
        _
      %p192 = scmp.le.s32.totalorder 1, %s13
      %p193 = scmp.lt.s32.totalorder %s13, 5
      %p194 = pnand %p192, %p193
      %p195 = pneg %p194
      // Predicated region
      $region33: #{tpu_custom_call.1} parent=5 // pred_check
        _
      $region34: #{tpu_custom_call.1} parent=5 // pred_check_branch
        %197 = sbr.rel (%p194) target = $region36
      $region35: #{tpu_custom_call.1} parent=5 // pred_region
        %s198 = ssub.s32 %s13, 1
        %p199 = scmp.lt.s32.totalorder %s22, 1
        %s200 = scalar_select %p199, %s22, 1
        %p201 = scmp.lt.s32.totalorder %s23, 1
        %s202 = scalar_select %p201, %s23, 1
        %s203 = smul.addr %s200, 2
        %s204 = sadd.s32 %s202, %s203
        %s205 = smul.addr %s204, 4
        %s206 = scalar_lea.vmem %s0, %s205
        %p207 = pneg %p53
        %p208 = pneg %p50
        %p209 = pneg %p74
        %p210 = pneg %p71
        %p211 = pneg %p95
        %p212 = pneg %p92
        %p213 = scmp.lt.s32.totalorder %s23, 1
        %s214 = scalar_select %p213, %s23, 1
        %s215 = smul.addr %s214, 2
        %s216 = scalar_lea.vmem %s3, %s215
        %p217 = pneg %p121
        %p218 = pneg %p118
        %p219 = pneg %p149
        %p220 = pneg %p146
        %s221 = sand.u32 %s136, 1
        %s222 = scalar_lea.sflag [#allocation3], %s221
        %s223 = sand.u32 %s136, 1
        %s224 = smul.addr %s223, 32
        %s225 = scalar_lea.vmem [#allocation2], %s224
        %p226 = scmp.lt.s32.totalorder %s22, 1
        %s227 = scalar_select %p226, %s22, 1
        %p228 = scmp.lt.s32.totalorder %s23, 1
        %s229 = scalar_select %p228, %s23, 1
        %s230 = smul.addr %s227, 2
        %s231 = sadd.s32 %s229, %s230
        %s232 = smul.addr %s231, 4
        %s233 = scalar_lea.vmem %s0, %s232
        %p234 = scmp.lt.s32.totalorder %s23, 1
        %s235 = scalar_select %p234, %s23, 1
        %s236 = smul.addr %s235, 2
        %s237 = scalar_lea.vmem %s3, %s236
        %v239 = vld [vmem:[%s233] sm:$0xf]
        %v240 = vpack.c.bf16 %v239, %v239
        %v241 = vld [vmem:[%s1] sm:$0xf]
        %v242 = vld [vmem:[%s1 + $0x4] sm:$0xf]
        %v243 = vld [vmem:[%s1 + $0x8] sm:$0xf]
        %v244 = vld [vmem:[%s1 + $0xc] sm:$0xf]
        %v245 = vld [vmem:[%s2] sm:$0xff]
        %v246 = vld [vmem:[%s2 + $0x8] sm:$0xff]
        %v247 = vld [vmem:[%s2 + $0x10] sm:$0xff]
        %v248 = vld [vmem:[%s2 + $0x18] sm:$0xff]
        %250 = vset.pattern.permute.xlu0 0
        %251 = vperm.xlu0 %250, %v245
        %v252 = vpop.permute.xlu0 %251
        %255 = vset.pattern.permute.xlu0 0
        %256 = vperm.xlu0 %255, %v246
        %v257 = vpop.permute.xlu0 %256
        %260 = vset.pattern.permute.xlu0 0
        %261 = vperm.xlu0 %260, %v247
        %v262 = vpop.permute.xlu0 %261
        %265 = vset.pattern.permute.xlu0 0
        %266 = vperm.xlu0 %265, %v248
        %v267 = vpop.permute.xlu0 %266
        %v273 = vunpack.c.l.b16 %v241
        %v274 = vunpack.c.l.b16 %v242
        %v275 = vunpack.c.l.b16 %v243
        %v276 = vunpack.c.l.b16 %v244
        %v277 = vpack.c.b16 %v274, %v273
        %v278 = vpack.c.b16 %v276, %v275
        %vm279 = vcmask 31744
        %v281 = vsel %vm279, %v277, 0
        %v284 = vsel %vm279, %v278, 0
        %vm286 = vcmask 1041408
        %v288 = vsel %vm286, %v240, 0
        %290 = vmatprep.subr.bf16.mxu0 0
        %291 = vmatpush1.bf16.msra.mxu0 %v288
        %292 = vmatprep.subr.bf16.mxu0 0
        %293 = vmatpush1.bf16.msra.mxu0 0
        %294 = vmatprep.subr.bf16.mxu0 0
        %295 = vmatpush1.bf16.msra.mxu0 0
        %296 = vmatprep.subr.bf16.mxu0 0
        %297 = vmatpush1.bf16.msra.mxu0 0
        %298 = vmatprep.subr.bf16.mxu0 0
        %299 = vmatpush1.bf16.msra.mxu0 0
        %300 = vmatprep.subr.bf16.mxu0 0
        %301 = vmatpush1.bf16.msra.mxu0 0
        %302 = vmatprep.subr.bf16.mxu0 0
        %303 = vmatpush1.bf16.msra.mxu0 0
        %304 = vmatprep.subr.bf16.mxu0 0
        %305 = vmatpush1.bf16.msra.mxu0 0
        %306 = vmatprep.subr.bf16.mxu0 0
        %307 = vmatpush1.bf16.msra.mxu0 0
        %308 = vmatprep.subr.bf16.mxu0 0
        %309 = vmatpush1.bf16.msra.mxu0 0
        %310 = vmatprep.subr.bf16.mxu0 0
        %311 = vmatpush1.bf16.msra.mxu0 0
        %312 = vmatprep.subr.bf16.mxu0 0
        %313 = vmatpush1.bf16.msra.mxu0 0
        %314 = vmatprep.subr.bf16.mxu0 0
        %315 = vmatpush1.bf16.msra.mxu0 0
        %316 = vmatprep.subr.bf16.mxu0 0
        %317 = vmatpush1.bf16.msra.mxu0 0
        %318 = vmatprep.subr.bf16.mxu0 0
        %319 = vmatpush1.bf16.msra.mxu0 0
        %320 = vmatprep.subr.bf16.mxu0 0
        %321 = vmatpush1.bf16.msra.mxu0 0
        %322 = vmatprep.mubr.bf16.mxu0 0
        %323 = vmatmul.mubr.bf16.gmra.mrb[0].mxu0 %v281
        %v324 = vpop.f32.mrb[0].mxu0
        %v325 = vadd.f32 %v252, %v324
        %v326 = vpop.f32.mrb[0].mxu0
        %v327 = vpop.f32.mrb[0].mxu0
        %v328 = vadd.f32 %v257, %v327
        %v329 = vpop.f32.mrb[0].mxu0
        %330 = vmatprep.mubr.bf16.mxu0 0
        %331 = vmatmul.mubr.bf16.gmra.mrb[0].mxu0 %v284
        %v332 = vpop.f32.mrb[0].mxu0
        %v333 = vadd.f32 %v262, %v332
        %v334 = vpop.f32.mrb[0].mxu0
        %v335 = vpop.f32.mrb[0].mxu0
        %v336 = vadd.f32 %v267, %v335
        %v337 = vpop.f32.mrb[0].mxu0
        %338 = vdwg.mxu0
        %v339 = vld [vmem:[%s237] sm:$0x1]
        %v340 = vld [vmem:[%s237 + $0x1] sm:$0x1]
        %v341 = vxor.u32 %v325, 2147483648
        %v342 = vxor.u32 %v328, 2147483648
        %v343 = vxor.u32 %v333, 2147483648
        %v344 = vmul.f32 %v341, 1.442695
        %v345 = vpow.pop %v344
        %v346 = vmul.f32 %v342, 1.442695
        %v347 = vpow.pop %v346
        %v348 = vmul.f32 %v343, 1.442695
        %v349 = vpow.pop %v348
        %v350 = vadd.f32 %v345, 1.0
        %v351 = vadd.f32 %v347, 1.0
        %v352 = vadd.f32 %v349, 1.0
        %v353 = vrcp.pop %v350
        %v354 = vmul.f32 1.0, %v353
        %v355 = vrcp.pop %v351
        %v356 = vmul.f32 1.0, %v355
        %v357 = vrcp.pop %v352
        %v358 = vmul.f32 1.0, %v357
        %359 = vset.pattern.permute.xlu0 1
        %360 = vperm.xlu0 %359, %v245
        %v361 = vpop.permute.xlu0 %360
        %363 = vset.pattern.permute.xlu0 1
        %364 = vperm.xlu0 %363, %v246
        %v365 = vpop.permute.xlu0 %364
        %367 = vset.pattern.permute.xlu0 1
        %368 = vperm.xlu0 %367, %v247
        %v369 = vpop.permute.xlu0 %368
        %v371 = vmul.f32 %v354, %v361
        %v372 = vmul.f32 %v356, %v365
        %v373 = vmul.f32 %v358, %v369
        %374 = vset.pattern.permute.xlu0 2
        %375 = vperm.xlu0 %374, %v245
        %v376 = vpop.permute.xlu0 %375
        %378 = vset.pattern.permute.xlu0 2
        %379 = vperm.xlu0 %378, %v246
        %v380 = vpop.permute.xlu0 %379
        %382 = vset.pattern.permute.xlu0 2
        %383 = vperm.xlu0 %382, %v247
        %v384 = vpop.permute.xlu0 %383
        %v386 = vlaneseq
        %v387 = vshrl.u32 %v386, 7
        %v388 = vsub.s32 0, %v387
        %v389 = vrot.slane %v339, %v388
        %v390 = vmul.f32 %v376, %v389
        %v391 = vmul.f32 %v380, %v389
        %v392 = vmul.f32 %v384, %v389
        %v393 = vadd.f32 %v371, %v390
        %v394 = vadd.f32 %v372, %v391
        %v395 = vadd.f32 %v373, %v392
        %396 = vset.pattern.permute.xlu0 3
        %397 = vperm.xlu0 %396, %v245
        %v398 = vpop.permute.xlu0 %397
        %400 = vset.pattern.permute.xlu0 3
        %401 = vperm.xlu0 %400, %v246
        %v402 = vpop.permute.xlu0 %401
        %404 = vset.pattern.permute.xlu0 3
        %405 = vperm.xlu0 %404, %v247
        %v406 = vpop.permute.xlu0 %405
        %v408 = vlaneseq
        %v409 = vshrl.u32 %v408, 7
        %v410 = vsub.s32 0, %v409
        %v411 = vrot.slane %v340, %v410
        %v412 = vmul.f32 %v398, %v411
        %v413 = vmul.f32 %v402, %v411
        %v414 = vmul.f32 %v406, %v411
        %v415 = vadd.f32 %v393, %v412
        %v416 = vadd.f32 %v394, %v413
        %v417 = vadd.f32 %v395, %v414
        %v418 = vmul.f32 %v336, 1.442695
        %v419 = vpow.pop %v418
        %420 = vset.pattern.permute.xlu0 4
        %421 = vperm.xlu0 %420, %v248
        %v422 = vpop.permute.xlu0 %421
        %v424 = vmul.f32 %v419, %v422
        %425 = vst [vmem:[%s225] sm:$0xff] %v415
        %426 = vst [vmem:[%s225 + $0x8] sm:$0xff] %v416
        %427 = vst [vmem:[%s225 + $0x10] sm:$0xff] %v417
        %428 = vst [vmem:[%s225 + $0x18] sm:$0xff] %v424
        %s429 = sand.u32 %s136, 1
        %s430 = scalar_lea.sflag [#allocation3], %s429
        %s431 = sand.u32 %s136, 1
        %s432 = smul.addr %s431, 32
        %s433 = scalar_lea.vmem [#allocation2], %s432
        // Predicated region
        $region37: #{tpu_custom_call.1} parent=35 // pred_check
          %p434 = pneg %p146
        $region38: #{tpu_custom_call.1} parent=35 // pred_check_branch
          %436 = sbr.rel (%p434) target = $region40
        $region39: #{tpu_custom_call.1} parent=35 // pred_region
          %s438 = ssub.s32 512, 512
          %439 = vsyncadd %s430, %s438
          %s440 = smul.addr %s22, 8
          %s441 = sadd.s32 %s23, %s440
          %s442 = smul.addr %s441, 128
          %s443 = scalar_lea.hbm %s4, %s442
          %s444 = sshll.u32 %s433, 4
          %s445 = int_to_ptr.vmem [resolvable:$true] %s444
          %450 = dma.vmem_to_hbm [thread:$0]  %s445, 512, %s443, %s430, 128, 256, 8
        $region40: #{tpu_custom_call.1} parent=35 // pred_fallthru
          _
      $region36: #{tpu_custom_call.1} parent=5 // pred_fallthru
        _
      %p451 = scmp.le.s32.totalorder 2, %s13
      // Predicated region
      $region41: #{tpu_custom_call.1} parent=5 // pred_check
        %p452 = pneg %p451
      $region42: #{tpu_custom_call.1} parent=5 // pred_check_branch
        %454 = sbr.rel (%p452) target = $region44
      $region43: #{tpu_custom_call.1} parent=5 // pred_region
        %s455 = ssub.s32 %s13, 2
        // Predicated region
        $region45: #{tpu_custom_call.1} parent=43 // pred_check
          %p456 = pneg %p152
        $region46: #{tpu_custom_call.1} parent=43 // pred_check_branch
          %458 = sbr.rel (%p456) target = $region48
        $region47: #{tpu_custom_call.1} parent=43 // pred_region
          %s459 = sand.u32 %s137, 1
          %s460 = scalar_lea.sflag [#allocation3], %s459
          %s461 = sand.u32 %s137, 1
          %s462 = smul.addr %s461, 32
          %s463 = scalar_lea.vmem [#allocation2], %s462
          %464 = dma.done %s460, 512
        $region48: #{tpu_custom_call.1} parent=43 // pred_fallthru
          _
      $region44: #{tpu_custom_call.1} parent=5 // pred_fallthru
        _
    $region6: #{tpu_custom_call.1} parent=1 // loop_footer
      %s17 = sadd.s32 1, %s13
    $region7: #{tpu_custom_call.1} parent=1 // loop_footer_branch
      %12 = sbr.rel target = $region3
    $region8: #{tpu_custom_call.1} parent=1 // loop_exit
      _
    %465 = vsyncpa [#allocation3], 1
    %s466 = scalar_lea.sflag [#allocation3], 1
    %467 = vsyncpa %s466, 1

</llo_original>
